<compile_context>
chip_gen: v7x
topology: tpu7x:2x2x1
jax: 0.10.0
libtpu: 0.0.40
codegen_flags: <defaults>
</compile_context>

<pallas_src>
import jax
import jax.numpy as jnp
from jax.experimental import pallas as pl
from jax.experimental.pallas import tpu as pltpu

_LANE = 128
_SUBLANE = 8
_TARGET_BLOCK_BYTES = 8 * 1024 * 1024   # per x block (read) == per out block (write)
_VMEM_LIMIT_BYTES = 48 * 1024 * 1024    # 4 * 8 MiB double-buffered data + headroom


def _locked_dropout_kernel(mask_ref, x_ref, o_ref):
    # mask_ref: (1, tn) pre-scaled dropout mask in x's dtype (matches PyTorch,
    # which builds the mask with x.data.new, i.e. in x's dtype).
    # x_ref / o_ref: (tt, tn) slab. Single broadcast multiply; DMA-bound.
    o_ref[...] = x_ref[...] * mask_ref[...]


def _round_down(v, m):
    return (v // m) * m


def _round_up(v, m):
    return -(-v // m) * m


def _choose_blocks(t, n, itemsize, target_bytes=_TARGET_BLOCK_BYTES):
    """Pick (tt, tn) with tt*tn*itemsize <= target_bytes, tn lane-dense
    (multiple of 128 or == n), tt a multiple of 8 (or == t), and >= 2 time
    steps whenever t > 8 so v7x can use both TensorCores."""
    row_bytes = n * itemsize
    if row_bytes * _SUBLANE <= target_bytes:
        # Common regime: full lane width, tile over time only.
        tn = n
        rows = target_bytes // row_bytes                 # >= 8 here
        tt = min(t, _round_down(rows, _SUBLANE))
        if tt >= t and t > _SUBLANE:
            # Grid would collapse to a single step: split so both TCs stream.
            tt = _round_up(-(-t // 2), _SUBLANE)
        if tt >= t:
            tt = t
    else:
        # Huge rows (large B*H): tile the lane dim too so one block never
        # exceeds the byte target (fixes the old max(8, ...) floor blow-up).
        tt = t if t <= _SUBLANE else _SUBLANE
        lanes = max(_LANE, _round_down(target_bytes // (tt * itemsize), _LANE))
        tn = n if lanes >= n else lanes
    return tt, tn


def locked_dropout(x, key, dropout=0.5, training=True,
                   block_rows=None, block_cols=None, donate_x=False):
    """Pallas LockedDropout. x: (T, B, H); key: jax PRNG key.

    The same (B, H) dropout mask (scaled by 1/(1-p)) is applied to every
    time step. `dropout` / `training` must be static Python values.
    Set donate_x=True when the caller donates x (aliases output onto x).
    """
    if (not training) or dropout == 0.0:
        return x

    t, b, h = x.shape
    n = b * h
    keep_prob = 1.0 - float(dropout)
    itemsize = x.dtype.itemsize

    # Locked mask, sampled once, pre-scaled, in x's dtype (same as PyTorch).
    keep = jax.random.bernoulli(key, p=keep_prob, shape=(1, n))
    scale = jnp.asarray(1.0 / keep_prob, dtype=x.dtype)
    mask = jnp.where(keep, scale, jnp.zeros((), dtype=x.dtype))

    # Lane-dense 2-D view (T, B*H). NOTE: if H (or B*H) is not a multiple of
    # 128 the last-dim stores are masked partial stores; pad H upstream for
    # peak store bandwidth on such models.
    x2 = x.reshape(t, n)

    tt, tn = _choose_blocks(t, n, itemsize)
    if block_rows is not None:                 # manual override (tests/tuning)
        tt = min(int(block_rows), t)
        if tt != t and tt % _SUBLANE != 0:
            tt = max(_SUBLANE, _round_down(tt, _SUBLANE))
        if tt >= t:
            tt = t
    if block_cols is not None:
        tn = min(int(block_cols), n)
        if tn != n:
            tn = max(_LANE, _round_down(tn, _LANE))
            if tn >= n:
                tn = n

    grid = (pl.cdiv(t, tt), pl.cdiv(n, tn))

    cost = pl.CostEstimate(
        flops=t * n,
        transcendentals=0,
        bytes_accessed=(2 * t * n + n) * itemsize,   # read x + write out + mask
    )

    out2 = pl.pallas_call(
        _locked_dropout_kernel,
        out_shape=jax.ShapeDtypeStruct((t, n), x.dtype),
        grid=grid,
        in_specs=[
            pl.BlockSpec((1, tn), lambda i, j: (0, j)),    # mask: tiny, reused
            pl.BlockSpec((tt, tn), lambda i, j: (i, j)),   # x slab
        ],
        out_specs=pl.BlockSpec((tt, tn), lambda i, j: (i, j)),
        compiler_params=pltpu.CompilerParams(
            # Every grid step is independent (mask is read-only), so both axes
            # may be sharded across v7x's two TensorCores.
            dimension_semantics=("parallel", "parallel"),
            # Explicit scoped-VMEM budget: guarantees full double-buffering on
            # v5e (16 MiB default would be exactly saturated) and leaves
            # 16 MiB headroom under v7x's 64 MiB per-TC VMEM.
            vmem_limit_bytes=_VMEM_LIMIT_BYTES,
        ),
        cost_estimate=cost,
        input_output_aliases={1: 0} if donate_x else {},
    )(mask, x2)

    return out2.reshape(t, b, h)


if __name__ == "__main__":
    key = jax.random.PRNGKey(0)
    kx, km = jax.random.split(key)

    T, B, H = 8, 4, 128   # small shapes: seq=8, batch=4, hidden=128
    p = 0.5
    x = jax.random.normal(kx, (T, B, H), dtype=jnp.float32)

    out = jax.block_until_ready(locked_dropout(x, km, dropout=p, training=True))

    # Reference: identical mask construction, broadcast over the time axis.
    keep = jax.random.bernoulli(km, p=1.0 - p, shape=(1, B * H)).reshape(1, B, H)
    ref_mask = jnp.where(keep, jnp.float32(1.0 / (1.0 - p)), jnp.float32(0.0))
    ref = x * ref_mask
    assert bool(jnp.allclose(out, ref)), "output mismatch vs reference"

    # Mask is locked over time: per-timestep scaling identical at every step.
    ratio = jnp.where(jnp.abs(x) > 0, out / x, ref_mask)
    assert bool(jnp.all(jnp.abs(ratio - ratio[0:1]) < 1e-5)), "mask not locked over time"

    # Multi-block time tiling (several grid steps share the resident mask).
    T2 = 32
    x_big = jax.random.normal(kx, (T2, B, H), dtype=jnp.float32)
    out_big = jax.block_until_ready(
        locked_dropout(x_big, km, dropout=p, training=True, block_rows=8))
    assert bool(jnp.allclose(out_big, x_big * ref_mask)), "multi-block time mismatch"

    # Lane-dim tiling path (2-D grid; mask block follows the lane index).
    out_lane = jax.block_until_ready(
        locked_dropout(x_big, km, dropout=p, training=True,
                       block_rows=8, block_cols=256))
    assert bool(jnp.allclose(out_lane, x_big * ref_mask)), "lane-tiled mismatch"

    # Donated-input path (input_output_aliases={1: 0}).
    out_alias = jax.block_until_ready(
        locked_dropout(x, km, dropout=p, training=True, donate_x=True))
    assert bool(jnp.allclose(out_alias, ref)), "aliased-output mismatch"

    # Eval-mode / p == 0 passthrough.
    assert bool(jnp.all(locked_dropout(x, km, dropout=p, training=False) == x))
    assert bool(jnp.all(locked_dropout(x, km, dropout=0.0, training=True) == x))

    # Auto block-sizing sanity checks (pure Python, no device allocations):
    # (a) inputs that fit one block still split into >=2 time steps (v7x TCs),
    tt_a, tn_a = _choose_blocks(64, 4 * 128, 4)
    assert tn_a == 512 and tt_a < 64 and tt_a % 8 == 0
    # (b) huge B*H falls back to lane tiling and never exceeds the byte target.
    tt_b, tn_b = _choose_blocks(16, 64 * 8192, 4)
    assert tn_b % 128 == 0 and tt_b * tn_b * 4 <= _TARGET_BLOCK_BYTES

    print("KERNEL_OK")
</pallas_src>

<mosaic_0001>
module attributes {stable_mosaic.version = 11 : i64} {
  func.func @_locked_dropout_kernel(%arg0: i32, %arg1: i32, %arg2: memref<1x512xf32, #tpu.memory_space<vmem>>, %arg3: memref<8x512xf32, #tpu.memory_space<vmem>>, %arg4: memref<8x512xf32, #tpu.memory_space<vmem>>) attributes {dimension_semantics = [#tpu.dimension_semantics<parallel>, #tpu.dimension_semantics<parallel>], iteration_bounds = array<i64: 1, 1>, scalar_prefetch = 0 : i64, scratch_operands = 0 : i64, tpu.core_type = #tpu.core_type<tc>, window_params = [{transform_indices = @transform_0, window_bounds = array<i64: 1, 512>}, {transform_indices = @transform_1, window_bounds = array<i64: 8, 512>}, {transform_indices = @transform_2, window_bounds = array<i64: 8, 512>}]} {
    %c0 = arith.constant 0 : index
    %c0_0 = arith.constant 0 : index
    %0 = vector.load %arg3[%c0, %c0_0] : memref<8x512xf32, #tpu.memory_space<vmem>>, vector<8x512xf32>
    %c0_1 = arith.constant 0 : index
    %c0_2 = arith.constant 0 : index
    %1 = vector.load %arg2[%c0_1, %c0_2] : memref<1x512xf32, #tpu.memory_space<vmem>>, vector<1x512xf32>
    %2 = vector.broadcast %1 : vector<1x512xf32> to vector<8x512xf32>
    %3 = arith.mulf %0, %2 : vector<8x512xf32>
    %c0_3 = arith.constant 0 : index
    %c0_4 = arith.constant 0 : index
    %4 = vector.load %arg4[%c0_3, %c0_4] : memref<8x512xf32, #tpu.memory_space<vmem>>, vector<8x512xf32>
    tpu.vector_store %arg4[%c0_3, %c0_4], %3 {strides = array<i32>} : memref<8x512xf32, #tpu.memory_space<vmem>>, vector<8x512xf32>,
    return
  }
  func.func @transform_0(%arg0: i32, %arg1: i32) -> (i32, i32) {
    %c0_i32 = arith.constant 0 : i32
    %c0_i32_0 = arith.constant 0 : i32
    return %c0_i32, %arg1 : i32, i32
  }
  func.func @transform_1(%arg0: i32, %arg1: i32) -> (i32, i32) {
    %c0_i32 = arith.constant 0 : i32
    return %arg0, %arg1 : i32, i32
  }
  func.func @transform_2(%arg0: i32, %arg1: i32) -> (i32, i32) {
    %c0_i32 = arith.constant 0 : i32
    return %arg0, %arg1 : i32, i32
  }
}

</mosaic_0001>

<llo_original>
// kernel: tpu_custom_call.1
$region0: #{tpu_custom_call.1}
  #allocation0 [shape = 'u32[]', space=smem, size = 0x4, offset = 0x4, fixed_abs, tag = 'smem constant byte address 0x4 - core index']
  #allocation1 [shape = 'u32[144,128]{1,0:T(1,128)}', space=vmem, size = 0x12000, scoped, tag = 'internal scratch']
  %s0 = inlined_call_operand.hbm [shape: f32[1,512], index: 0, kind: input, shape index: {}]
  %s1 = inlined_call_operand.hbm [shape: f32[8,512], index: 1, kind: input, shape index: {}]
  %s2 = inlined_call_operand.hbm [shape: f32[8,512], index: 2, kind: output, shape index: {}]
  %s3 = sld [smem:[#allocation0]]
  $region26: #{tpu_custom_call.1} parent=0
    _
  %s5 = ssub.s32 1, %s3
  %s6 = scalar_select 0, %s5, %s3
  $region1: #{tpu_custom_call.1} parent=0
    #allocation2 [shape = 'u8[2048]{0}', space=vmem, size = 0x800, scoped, tag = 'input window, operand 0, single buffered']
    #allocation3 [shape = 's32[1]{0}', space=sflag, size = 0x4, scoped, tag = 'scoped memory for tpu_custom_call.1']
    #allocation4 [shape = 's32[1]{0}', space=sflag, size = 0x4, scoped, tag = 'scoped memory for tpu_custom_call.1']
    #allocation5 [shape = 'u8[16384]{0}', space=vmem, size = 0x4000, scoped, tag = 'input window, operand 1, single buffered']
    #allocation6 [shape = 's32[1]{0}', space=sflag, size = 0x4, scoped, tag = 'scoped memory for tpu_custom_call.1']
    #allocation7 [shape = 'u8[16384]{0}', space=vmem, size = 0x4000, scoped, tag = 'output window, operand 0, single buffered']
    %7 = vsyncpa [#allocation3], 0
    %8 = vsyncpa [#allocation6], 0
    %9 = vsyncpa [#allocation4], 0
    // Predicated region
    $region2: #{tpu_custom_call.1} parent=1 // pred_check
      _
    $region3: #{tpu_custom_call.1} parent=1 // pred_check_branch
      %11 = sbr.rel (0) target = $region5
    $region4: #{tpu_custom_call.1} parent=1 // pred_region
      %s13 = ssub.s32 64, 64
      %14 = vsyncadd [#allocation3], %s13
      %s16 = sshll.u32 [#allocation2], 4
      %s17 = int_to_ptr.vmem [resolvable:$true] %s16
      %19 = dma.hbm_to_vmem [thread:$0]  %s0, 64, %s17, [#allocation3]
    $region5: #{tpu_custom_call.1} parent=1 // pred_fallthru
      _
    // Predicated region
    $region6: #{tpu_custom_call.1} parent=1 // pred_check
      _
    $region7: #{tpu_custom_call.1} parent=1 // pred_check_branch
      %21 = sbr.rel (0) target = $region9
    $region8: #{tpu_custom_call.1} parent=1 // pred_region
      %s23 = ssub.s32 512, 512
      %24 = vsyncadd [#allocation6], %s23
      %s26 = sshll.u32 [#allocation5], 4
      %s27 = int_to_ptr.vmem [resolvable:$true] %s26
      %29 = dma.hbm_to_vmem [thread:$0]  %s1, 512, %s27, [#allocation6]
    $region9: #{tpu_custom_call.1} parent=1 // pred_fallthru
      _
    // Predicated region
    $region10: #{tpu_custom_call.1} parent=1 // pred_check
      _
    $region11: #{tpu_custom_call.1} parent=1 // pred_check_branch
      %31 = sbr.rel (0) target = $region13
    $region12: #{tpu_custom_call.1} parent=1 // pred_region
      %32 = dma.done [#allocation3], 64
    $region13: #{tpu_custom_call.1} parent=1 // pred_fallthru
      _
    // Predicated region
    $region14: #{tpu_custom_call.1} parent=1 // pred_check
      _
    $region15: #{tpu_custom_call.1} parent=1 // pred_check_branch
      %34 = sbr.rel (0) target = $region17
    $region16: #{tpu_custom_call.1} parent=1 // pred_region
      %35 = dma.done [#allocation6], 512
    $region17: #{tpu_custom_call.1} parent=1 // pred_fallthru
      _
    %v36 = vld [vmem:[#allocation5] sm:$0xff]
    %v37 = vld [vmem:[#allocation5 + $0x8] sm:$0xff]
    %v38 = vld [vmem:[#allocation5 + $0x10] sm:$0xff]
    %v39 = vld [vmem:[#allocation5 + $0x18] sm:$0xff]
    %v40 = vld [vmem:[#allocation2] sm:$0xf]
    %v42 = vlaneseq
    %v43 = vshrl.u32 %v42, 7
    %v44 = vsub.s32 0, %v43
    %v45 = vrot.slane %v40, %v44
    %v46 = vlaneseq
    %v47 = vshrl.u32 %v46, 7
    %v48 = vsub.s32 1, %v47
    %v49 = vrot.slane %v40, %v48
    %v50 = vlaneseq
    %v51 = vshrl.u32 %v50, 7
    %v52 = vsub.s32 2, %v51
    %v53 = vrot.slane %v40, %v52
    %v54 = vlaneseq
    %v55 = vshrl.u32 %v54, 7
    %v56 = vsub.s32 3, %v55
    %v57 = vrot.slane %v40, %v56
    %v62 = vmul.f32 %v36, %v45
    %v63 = vmul.f32 %v37, %v49
    %v64 = vmul.f32 %v38, %v53
    %v65 = vmul.f32 %v39, %v57
    %66 = vst [vmem:[#allocation7] sm:$0xff] %v62
    %67 = vst [vmem:[#allocation7 + $0x8] sm:$0xff] %v63
    %68 = vst [vmem:[#allocation7 + $0x10] sm:$0xff] %v64
    %69 = vst [vmem:[#allocation7 + $0x18] sm:$0xff] %v65
    // Predicated region
    $region18: #{tpu_custom_call.1} parent=1 // pred_check
      _
    $region19: #{tpu_custom_call.1} parent=1 // pred_check_branch
      %71 = sbr.rel (0) target = $region21
    $region20: #{tpu_custom_call.1} parent=1 // pred_region
      %s73 = ssub.s32 512, 512
      %74 = vsyncadd [#allocation4], %s73
      %s76 = sshll.u32 [#allocation7], 4
      %s77 = int_to_ptr.vmem [resolvable:$true] %s76
      %79 = dma.vmem_to_hbm [thread:$0]  %s77, 512, %s2, [#allocation4]
    $region21: #{tpu_custom_call.1} parent=1 // pred_fallthru
      _
    // Predicated region
    $region22: #{tpu_custom_call.1} parent=1 // pred_check
      _
    $region23: #{tpu_custom_call.1} parent=1 // pred_check_branch
      %81 = sbr.rel (0) target = $region25
    $region24: #{tpu_custom_call.1} parent=1 // pred_region
      %82 = dma.done [#allocation4], 512
    $region25: #{tpu_custom_call.1} parent=1 // pred_fallthru
      _
    %83 = vsyncpa [#allocation3], 1
    %84 = vsyncpa [#allocation6], 1
    %85 = vsyncpa [#allocation4], 1

</llo_original>
